<compile_context>
chip_gen: v7x
topology: tpu7x:2x2x1
jax: 0.10.0
libtpu: 0.0.40
codegen_flags: <defaults>
</compile_context>

<pallas_src>
import functools

import jax
import jax.numpy as jnp
from jax import lax
from jax.experimental import pallas as pl
from jax.experimental.pallas import tpu as pltpu


def _round_up(n, m):
    return ((n + m - 1) // m) * m


def _choose_b_tile(B, C, max_rows=64):
    """Pick a batch tile: divides B, gives (8,128)-legal blocks, prefers >=2 parallel blocks."""
    divs = [d for d in range(1, B + 1) if B % d == 0]
    # Output block first dim must be a multiple of 8 or equal B; row block b_tile*C is then
    # automatically a multiple of 8 (or the full row extent when d == B).
    cands = [d for d in divs if (d % 8 == 0 or d == B) and d * C <= max_rows]
    two = [d for d in cands if B // d >= 2]      # >=2 blocks on the "parallel" axis (v7x)
    if two:
        return max(two)
    if cands:
        return max(cands)
    return B


def _choose_s_tile(S, R_tile, itemsize, target_bytes=4 * 1024 * 1024):
    """Pick an S tile targeting ~4 MiB of x per grid step (amortizes per-step overhead)."""
    s = (target_bytes // (R_tile * itemsize)) // 128 * 128
    return int(max(128, min(s, _round_up(S, 128))))


def _make_kernel(*, C, b_tile, n_s, n_full, n_last_full, tail):
    R_tile = b_tile * C
    unroll = max(1, min(8, 256 // max(R_tile, 1)))   # bound vreg pressure of the unrolled loop

    def _add_slice(x_ref, k, acc):
        # Lane-aligned 128-wide load straight from the VMEM block; cast per-slice so bf16
        # inputs stream at half the HBM bytes and accumulate in f32.
        off = pl.multiple_of(k * 128, 128)
        return acc + x_ref[:, pl.ds(off, 128)].astype(jnp.float32)

    def kernel(x_ref, w_ref, b_ref, o_ref, acc_ref):
        # x_ref:  (R_tile, s_tile) tile of the (B*C, S)-flattened input (native dtype)
        # w_ref:  (C, D_pad) resident, already scaled by 1/S
        # b_ref:  (1, D_pad) resident
        # o_ref:  (b_tile, D_pad), resident across the S axis, written on the last step only
        # acc_ref:(R_tile, 128) f32 scratch holding the lane-wise running sum
        s_idx = pl.program_id(1)

        @pl.when(s_idx == 0)
        def _init():
            acc_ref[...] = jnp.zeros_like(acc_ref)

        body = functools.partial(_add_slice, x_ref)

        if n_s > 1:
            @pl.when(s_idx < n_s - 1)
            def _full_step():
                acc_ref[...] = lax.fori_loop(0, n_full, body, acc_ref[...],
                                             unroll=min(unroll, n_full))

        @pl.when(s_idx == n_s - 1)
        def _last_step():
            acc = acc_ref[...]
            if n_last_full > 0:
                acc = lax.fori_loop(0, n_last_full, body, acc,
                                    unroll=min(unroll, n_last_full))
            if tail > 0:
                # Ragged tail of the sample axis: mask lanes beyond S (block overhangs HBM).
                off = pl.multiple_of(n_last_full * 128, 128)
                sl = x_ref[:, pl.ds(off, 128)].astype(jnp.float32)
                lane = lax.broadcasted_iota(jnp.int32, sl.shape, 1)
                acc = acc + jnp.where(lane < tail, sl, 0.0)

            # Finalize (once per batch block): single XLU lane-reduce, then per-batch-row
            # broadcast-FMAs against the resident (C, D_pad) weights -- no tiny MXU matmul.
            pooled = jnp.sum(acc, axis=-1, keepdims=True)        # (R_tile, 1)
            w = w_ref[...]                                       # (C, D_pad), 1/S folded in
            rows = []
            for b in range(b_tile):
                p_b = pooled[b * C:(b + 1) * C, :]               # (C, 1) static slice
                rows.append(jnp.sum(p_b * w, axis=0, keepdims=True))   # (1, D_pad)
            y = jnp.concatenate(rows, axis=0) + b_ref[...]       # (b_tile, D_pad)
            o_ref[...] = jnp.maximum(y, 0.0)                     # ReLU, lane-dense store

    return kernel


def parallel_encoders(x, weights, biases, *, s_tile=None, b_tile=None):
    """x: (B, C, S) f32/bf16; weights: list of (C, d_i); biases: list of (d_i,).
    Returns (B, sum d_i) float32, matching Parallel_encoders.forward with the synthetic
    mean-pool + linear + relu encoders."""
    B, C, S = x.shape

    # Column-concatenated params: mirrors out[:, curr:curr+d_i] = encoder_i(x).
    W = jnp.concatenate([jnp.asarray(w, jnp.float32) for w in weights], axis=1)   # (C, D)
    bvec = jnp.concatenate([jnp.asarray(b, jnp.float32) for b in biases], axis=0)  # (D,)
    D = W.shape[1]

    # Fold the mean's 1/S into W once (tiny, outside the hot path).
    W_scaled = W * (1.0 / S)

    # Lane-dense output: pad D up to a multiple of 128 (unmasked stores); slice afterwards.
    D_pad = _round_up(D, 128)
    if D_pad != D:
        W_scaled = jnp.pad(W_scaled, ((0, 0), (0, D_pad - D)))
        bvec = jnp.pad(bvec, (0, D_pad - D))
    b2 = bvec[None, :]                                           # (1, D_pad)

    # Batch tiling (must divide B; blocks stay (8,128)-legal).
    if b_tile is None or B % b_tile != 0 or (b_tile % 8 != 0 and b_tile != B):
        b_tile = _choose_b_tile(B, C)
    R_tile = b_tile * C
    n_b = B // b_tile

    # Sample-axis tiling: multiple of 128, no wrapper-side padding of x (ragged tail is
    # masked in-kernel).
    itemsize = jnp.dtype(x.dtype).itemsize
    if s_tile is None:
        s_tile = _choose_s_tile(S, R_tile, itemsize)
    else:
        s_tile = int(max(128, _round_up(int(s_tile), 128)))
        s_tile = min(s_tile, _round_up(S, 128))
    n_s = -(-S // s_tile)
    last_valid = S - (n_s - 1) * s_tile
    n_last_full = last_valid // 128
    tail = last_valid % 128
    n_full = s_tile // 128

    # Flatten (B, C) into one dense row axis (free reshape, no HBM copy, dtype untouched).
    x2d = x.reshape(B * C, S)

    kernel = _make_kernel(C=C, b_tile=b_tile, n_s=n_s, n_full=n_full,
                          n_last_full=n_last_full, tail=tail)

    cost = pl.CostEstimate(
        flops=int(B * C * S + 2 * B * C * D_pad + 2 * B * D_pad),
        transcendentals=0,
        bytes_accessed=int(B * C * S * itemsize + (C + 1) * D_pad * 4 + B * D_pad * 4),
    )

    out_padded = pl.pallas_call(
        kernel,
        out_shape=jax.ShapeDtypeStruct((B, D_pad), jnp.float32),
        grid=(n_b, n_s),
        in_specs=[
            pl.BlockSpec((R_tile, s_tile), lambda i, s: (i, s)),
            pl.BlockSpec((C, D_pad), lambda i, s: (0, 0)),       # resident across the grid
            pl.BlockSpec((1, D_pad), lambda i, s: (0, 0)),       # resident across the grid
        ],
        out_specs=pl.BlockSpec((b_tile, D_pad), lambda i, s: (i, 0)),  # same block over S
        scratch_shapes=[pltpu.VMEM((R_tile, 128), jnp.float32)],
        compiler_params=pltpu.CompilerParams(
            dimension_semantics=("parallel", "arbitrary"),
            vmem_limit_bytes=32 * 1024 * 1024,
        ),
        cost_estimate=cost,
    )(x2d, W_scaled, b2)

    return out_padded[:, :D]


def _reference(x, weights, biases):
    """Plain-JAX re-implementation of Parallel_encoders.forward with the synthetic encoders."""
    pooled = jnp.mean(x.astype(jnp.float32), axis=-1)
    outs = []
    for W_i, b_i in zip(weights, biases):
        outs.append(jnp.maximum(pooled @ W_i + b_i[None, :], 0.0))
    return jnp.concatenate(outs, axis=1).astype(jnp.float32)   # out[:, curr:curr+d_i] = ...


def _make_inputs(key, B, C, S, out_dims, dtype=jnp.float32):
    kx, *kparams = jax.random.split(key, 1 + 2 * len(out_dims))
    x = jax.random.normal(kx, (B, C, S), dtype=jnp.float32).astype(dtype)
    weights, biases = [], []
    for i, d in enumerate(out_dims):
        kw, kb = kparams[2 * i], kparams[2 * i + 1]
        weights.append(jax.random.normal(kw, (C, d), dtype=jnp.float32) * 0.1)
        biases.append(jax.random.normal(kb, (d,), dtype=jnp.float32) * 0.1)
    return x, weights, biases


if __name__ == "__main__":
    key = jax.random.PRNGKey(0)
    k1, k2, k3 = jax.random.split(key, 3)

    # Small shapes consistent with the module: (batch, num_channels, num_samples).
    B, C, S = 2, 4, 16
    out_dims = [8, 16, 8]                      # three parallel encoders; out_dim = 32
    x, weights, biases = _make_inputs(k1, B, C, S, out_dims)
    out = jax.block_until_ready(parallel_encoders(x, weights, biases))
    ref = _reference(x, weights, biases)
    assert out.shape == (B, sum(out_dims))
    assert jnp.allclose(out, ref, atol=1e-4, rtol=1e-4), "mismatch vs reference (small)"

    # Multi-step S accumulator, ragged last tile (400 % 256 != 0), 2 parallel batch blocks.
    B2, C2, S2 = 16, 2, 400
    out_dims2 = [24, 40]
    x2, weights2, biases2 = _make_inputs(k2, B2, C2, S2, out_dims2)
    out2 = jax.block_until_ready(parallel_encoders(x2, weights2, biases2, s_tile=256))
    ref2 = _reference(x2, weights2, biases2)
    assert out2.shape == (B2, sum(out_dims2))
    assert jnp.allclose(out2, ref2, atol=1e-4, rtol=1e-4), "mismatch vs reference (tiled)"

    # bf16 input path: DMA'd as bf16, cast per 128-lane slice into the f32 accumulator.
    B3, C3, S3 = 4, 4, 300
    out_dims3 = [16]
    x3, weights3, biases3 = _make_inputs(k3, B3, C3, S3, out_dims3, dtype=jnp.bfloat16)
    out3 = jax.block_until_ready(parallel_encoders(x3, weights3, biases3, s_tile=128))
    ref3 = _reference(x3, weights3, biases3)
    assert out3.shape == (B3, sum(out_dims3))
    assert jnp.allclose(out3, ref3, atol=1e-3, rtol=1e-3), "mismatch vs reference (bf16)"

    print("KERNEL_OK")
</pallas_src>

<mosaic_0001>
module attributes {stable_mosaic.version = 11 : i64} {
  func.func @kernel(%arg0: i32, %arg1: i32, %arg2: memref<8x128xf32, #tpu.memory_space<vmem>>, %arg3: memref<4x128xf32, #tpu.memory_space<vmem>>, %arg4: memref<1x128xf32, #tpu.memory_space<vmem>>, %arg5: memref<2x128xf32, #tpu.memory_space<vmem>>, %arg6: memref<8x128xf32, #tpu.memory_space<vmem>>) attributes {dimension_semantics = [#tpu.dimension_semantics<parallel>, #tpu.dimension_semantics<arbitrary>], iteration_bounds = array<i64: 1, 1>, scalar_prefetch = 0 : i64, scratch_operands = 1 : i64, tpu.core_type = #tpu.core_type<tc>, window_params = [{transform_indices = @transform_0, window_bounds = array<i64: 8, 128>}, {pipeline_mode = #tpu.pipeline_mode<synchronous>, transform_indices = @transform_1, window_bounds = array<i64: 4, 128>}, {pipeline_mode = #tpu.pipeline_mode<synchronous>, transform_indices = @transform_2, window_bounds = array<i64: 1, 128>}, {transform_indices = @transform_3, window_bounds = array<i64: 2, 128>}]} {
    %c0_i32 = arith.constant 0 : i32
    %0 = arith.cmpi eq, %arg1, %c0_i32 : i32
    %1 = arith.extui %0 : i1 to i32
    %c0_i32_0 = arith.constant 0 : i32
    %2 = arith.cmpi ne, %1, %c0_i32_0 : i32
    scf.if %2 {
      %cst = arith.constant 0.000000e+00 : f32
      %6 = vector.broadcast %cst : f32 to vector<8x128xf32>
      %c0 = arith.constant 0 : index
      %c0_3 = arith.constant 0 : index
      %7 = vector.load %arg6[%c0, %c0_3] : memref<8x128xf32, #tpu.memory_space<vmem>>, vector<8x128xf32>
      tpu.vector_store %arg6[%c0, %c0_3], %6 {strides = array<i32>} : memref<8x128xf32, #tpu.memory_space<vmem>>, vector<8x128xf32>,
    } else {
    }
    %c0_i32_1 = arith.constant 0 : i32
    %3 = arith.cmpi eq, %arg1, %c0_i32_1 : i32
    %4 = arith.extui %3 : i1 to i32
    %c0_i32_2 = arith.constant 0 : i32
    %5 = arith.cmpi ne, %4, %c0_i32_2 : i32
    scf.if %5 {
      %c0 = arith.constant 0 : index
      %c0_3 = arith.constant 0 : index
      %6 = vector.load %arg6[%c0, %c0_3] : memref<8x128xf32, #tpu.memory_space<vmem>>, vector<8x128xf32>
      %c0_i32_4 = arith.constant 0 : i32
      %7 = tpu.assume_multiple %c0_i32_4, 128 : i32
      %c0_5 = arith.constant 0 : index
      %8 = arith.index_cast %7 : i32 to index
      %9 = vector.load %arg2[%c0_5, %8] : memref<8x128xf32, #tpu.memory_space<vmem>>, vector<8x128xf32>
      %10 = tpu.iota {dimensions = array<i32: 1>} : vector<8x128xi32>
      %c16_i32 = arith.constant 16 : i32
      %11 = vector.broadcast %c16_i32 : i32 to vector<8x128xi32>
      %12 = arith.cmpi slt, %10, %11 : vector<8x128xi32>
      %cst = arith.constant 0.000000e+00 : f32
      %13 = vector.broadcast %cst : f32 to vector<8x128xf32>
      %14 = arith.select %12, %9, %13 : vector<8x128xi1>, vector<8x128xf32>
      %15 = arith.addf %6, %14 : vector<8x128xf32>
      %cst_6 = arith.constant dense<0.000000e+00> : vector<8xf32>
      %16 = vector.multi_reduction <add>, %15, %cst_6 [1] : vector<8x128xf32> to vector<8xf32>
      %17 = vector.shape_cast %16 : vector<8xf32> to vector<8x1xf32>
      %c0_7 = arith.constant 0 : index
      %c0_8 = arith.constant 0 : index
      %18 = vector.load %arg3[%c0_7, %c0_8] : memref<4x128xf32, #tpu.memory_space<vmem>>, vector<4x128xf32>
      %19 = vector.extract_strided_slice %17 {offsets = [0, 0], sizes = [4, 1], strides = [1, 1]} : vector<8x1xf32> to vector<4x1xf32>
      %20 = vector.broadcast %19 : vector<4x1xf32> to vector<4x128xf32>
      %21 = arith.mulf %20, %18 : vector<4x128xf32>
      %cst_9 = arith.constant dense<0.000000e+00> : vector<128xf32>
      %22 = vector.multi_reduction <add>, %21, %cst_9 [0] : vector<4x128xf32> to vector<128xf32>
      %23 = vector.shape_cast %22 : vector<128xf32> to vector<1x128xf32>
      %24 = vector.extract_strided_slice %17 {offsets = [4, 0], sizes = [4, 1], strides = [1, 1]} : vector<8x1xf32> to vector<4x1xf32>
      %25 = vector.broadcast %24 : vector<4x1xf32> to vector<4x128xf32>
      %26 = arith.mulf %25, %18 : vector<4x128xf32>
      %cst_10 = arith.constant dense<0.000000e+00> : vector<128xf32>
      %27 = vector.multi_reduction <add>, %26, %cst_10 [0] : vector<4x128xf32> to vector<128xf32>
      %28 = vector.shape_cast %27 : vector<128xf32> to vector<1x128xf32>
      %29 = tpu.concatenate %23, %28 in 0 : vector<1x128xf32>, vector<1x128xf32> -> vector<2x128xf32>
      %c0_11 = arith.constant 0 : index
      %c0_12 = arith.constant 0 : index
      %30 = vector.load %arg4[%c0_11, %c0_12] : memref<1x128xf32, #tpu.memory_space<vmem>>, vector<1x128xf32>
      %31 = vector.broadcast %30 : vector<1x128xf32> to vector<2x128xf32>
      %32 = arith.addf %29, %31 : vector<2x128xf32>
      %cst_13 = arith.constant 0.000000e+00 : f32
      %33 = vector.broadcast %cst_13 : f32 to vector<2x128xf32>
      %34 = arith.maximumf %32, %33 : vector<2x128xf32>
      %c0_14 = arith.constant 0 : index
      %c0_15 = arith.constant 0 : index
      %35 = vector.load %arg5[%c0_14, %c0_15] : memref<2x128xf32, #tpu.memory_space<vmem>>, vector<2x128xf32>
      tpu.vector_store %arg5[%c0_14, %c0_15], %34 {strides = array<i32>} : memref<2x128xf32, #tpu.memory_space<vmem>>, vector<2x128xf32>,
    } else {
    }
    return
  }
  func.func @transform_0(%arg0: i32, %arg1: i32) -> (i32, i32) {
    %c0_i32 = arith.constant 0 : i32
    return %arg0, %arg1 : i32, i32
  }
  func.func @transform_1(%arg0: i32, %arg1: i32) -> (i32, i32) {
    %c0_i32 = arith.constant 0 : i32
    %c0_i32_0 = arith.constant 0 : i32
    %c0_i32_1 = arith.constant 0 : i32
    return %c0_i32, %c0_i32_0 : i32, i32
  }
  func.func @transform_2(%arg0: i32, %arg1: i32) -> (i32, i32) {
    %c0_i32 = arith.constant 0 : i32
    %c0_i32_0 = arith.constant 0 : i32
    %c0_i32_1 = arith.constant 0 : i32
    return %c0_i32, %c0_i32_0 : i32, i32
  }
  func.func @transform_3(%arg0: i32, %arg1: i32) -> (i32, i32) {
    %c0_i32 = arith.constant 0 : i32
    %c0_i32_0 = arith.constant 0 : i32
    return %arg0, %c0_i32 : i32, i32
  }
}

</mosaic_0001>

<llo_original>
// kernel: tpu_custom_call.1
$region0: #{tpu_custom_call.1}
  #allocation0 [shape = 'u32[]', space=smem, size = 0x4, offset = 0x4, fixed_abs, tag = 'smem constant byte address 0x4 - core index']
  #allocation1 [shape = 'u32[144,128]{1,0:T(1,128)}', space=vmem, size = 0x12000, scoped, tag = 'internal scratch']
  #allocation2 [shape = 'f32[8,128]{1,0:T(8,128)}', space=vmem, size = 0x1000, scoped, tag = 'scratch operand']
  %s0 = inlined_call_operand.hbm [shape: f32[8,16], index: 0, kind: input, shape index: {}]
  %s1 = inlined_call_operand.hbm [shape: f32[4,128], index: 1, kind: input, shape index: {}]
  %s2 = inlined_call_operand.vmem [shape: f32[1,128], index: 2, kind: input, shape index: {}]
  %s3 = inlined_call_operand.hbm [shape: f32[2,128], index: 3, kind: output, shape index: {}]
  %s4 = sld [smem:[#allocation0]]
  $region34: #{tpu_custom_call.1} parent=0
    _
  %s6 = ssub.s32 1, %s4
  %s7 = scalar_select 0, %s6, %s4
  $region1: #{tpu_custom_call.1} parent=0
    #allocation3 [shape = 'u8[4096]{0}', space=vmem, size = 0x1000, scoped, tag = 'input window, operand 0, single buffered']
    #allocation4 [shape = 's32[1]{0}', space=sflag, size = 0x4, scoped, tag = 'scoped memory for tpu_custom_call.1']
    #allocation5 [shape = 's32[1]{0}', space=sflag, size = 0x4, scoped, tag = 'scoped memory for tpu_custom_call.1']
    #allocation6 [shape = 'u8[2048]{0}', space=vmem, size = 0x800, scoped, tag = 'input window, operand 1, single buffered']
    #allocation7 [shape = 's32[1]{0}', space=sflag, size = 0x4, scoped, tag = 'scoped memory for tpu_custom_call.1']
    #allocation8 [shape = 'u8[1024]{0}', space=vmem, size = 0x400, scoped, tag = 'output window, operand 0, single buffered']
    %8 = vsyncpa [#allocation4], 0
    %9 = vsyncpa [#allocation7], 0
    %10 = vsyncpa [#allocation5], 0
    // Predicated region
    $region2: #{tpu_custom_call.1} parent=1 // pred_check
      _
    $region3: #{tpu_custom_call.1} parent=1 // pred_check_branch
      %12 = sbr.rel (0) target = $region5
    $region4: #{tpu_custom_call.1} parent=1 // pred_region
      %s14 = ssub.s32 128, 128
      %15 = vsyncadd [#allocation4], %s14
      %s17 = sshll.u32 [#allocation3], 4
      %s18 = int_to_ptr.vmem [resolvable:$true] %s17
      %20 = dma.hbm_to_vmem [thread:$0]  %s0, 128, %s18, [#allocation4]
    $region5: #{tpu_custom_call.1} parent=1 // pred_fallthru
      _
    // Predicated region
    $region6: #{tpu_custom_call.1} parent=1 // pred_check
      _
    $region7: #{tpu_custom_call.1} parent=1 // pred_check_branch
      %22 = sbr.rel (0) target = $region9
    $region8: #{tpu_custom_call.1} parent=1 // pred_region
      %s24 = ssub.s32 64, 64
      %25 = vsyncadd [#allocation7], %s24
      %s27 = sshll.u32 [#allocation6], 4
      %s28 = int_to_ptr.vmem [resolvable:$true] %s27
      %30 = dma.hbm_to_vmem [thread:$0]  %s1, 64, %s28, [#allocation7]
    $region9: #{tpu_custom_call.1} parent=1 // pred_fallthru
      _
    // Predicated region
    $region10: #{tpu_custom_call.1} parent=1 // pred_check
      _
    $region11: #{tpu_custom_call.1} parent=1 // pred_check_branch
      %32 = sbr.rel (0) target = $region13
    $region12: #{tpu_custom_call.1} parent=1 // pred_region
      _
    $region13: #{tpu_custom_call.1} parent=1 // pred_fallthru
      _
    // Predicated region
    $region14: #{tpu_custom_call.1} parent=1 // pred_check
      _
    $region15: #{tpu_custom_call.1} parent=1 // pred_check_branch
      %34 = sbr.rel (0) target = $region17
    $region16: #{tpu_custom_call.1} parent=1 // pred_region
      %35 = dma.done [#allocation4], 128
    $region17: #{tpu_custom_call.1} parent=1 // pred_fallthru
      _
    // Predicated region
    $region18: #{tpu_custom_call.1} parent=1 // pred_check
      _
    $region19: #{tpu_custom_call.1} parent=1 // pred_check_branch
      %37 = sbr.rel (0) target = $region21
    $region20: #{tpu_custom_call.1} parent=1 // pred_region
      %38 = dma.done [#allocation7], 64
    $region21: #{tpu_custom_call.1} parent=1 // pred_fallthru
      _
    %p39 = scmp.eq.s32.totalorder 0, 0
    // Predicated region
    $region22: #{tpu_custom_call.1} parent=1 // pred_check
      %p40 = pneg %p39
    $region23: #{tpu_custom_call.1} parent=1 // pred_check_branch
      %42 = sbr.rel (%p40) target = $region25
    $region24: #{tpu_custom_call.1} parent=1 // pred_region
      %43 = vst [vmem:[#allocation2] sm:$0xff] 0.0
      %v44 = vld [vmem:[#allocation2] sm:$0xff]
      %v45 = vld [vmem:[#allocation3] sm:$0xff]
      %v46 = vlaneseq
      %v47 = vand.u32 %v46, 127
      %vm48 = vcmp.lt.s32.totalorder %v47, 16
      %v49 = vsel %vm48, %v45, 0.0
      %v50 = vadd.f32 %v44, %v49
      %51 = vadd.xlane.f32.xlu0 %v50
      %v52 = vpop.xlane.xlu0 %51
      %v53 = vld [vmem:[#allocation6] sm:$0xf]
      %v54 = vmul.f32 %v52, %v53
      %vm55 = vcmask 1043456
      %v56 = vsel %vm55, %v54, 0.0
      %v57 = vrot.slane %v56, 4
      %v58 = vadd.f32 %v56, %v57
      %v59 = vrot.slane %v58, 2
      %v60 = vadd.f32 %v58, %v59
      %v61 = vrot.slane %v60, 1
      %v62 = vadd.f32 %v60, %v61
      %v64 = vrot.slane %v53, 4
      %v66 = vmul.f32 %v52, %v64
      %v68 = vrot.slane %v66, 4
      %v70 = vsel %vm55, %v68, 0.0
      %v71 = vrot.slane %v70, 4
      %v72 = vadd.f32 %v70, %v71
      %v73 = vrot.slane %v72, 2
      %v74 = vadd.f32 %v72, %v73
      %v75 = vrot.slane %v74, 1
      %v76 = vadd.f32 %v74, %v75
      %vm77 = vcmask 1040384
      %v78 = vsel %vm77, %v62, %v76
      %v79 = vld [vmem:[%s2] sm:$0x1]
      %v81 = vlaneseq
      %v82 = vshrl.u32 %v81, 7
      %v83 = vsub.s32 0, %v82
      %v84 = vrot.slane %v79, %v83
      %v86 = vadd.f32 %v78, %v84
      %v87 = vmax.f32 %v86, 0.0
      %88 = vst [vmem:[#allocation8] sm:$0x3] %v87
    $region25: #{tpu_custom_call.1} parent=1 // pred_fallthru
      _
    // Predicated region
    $region26: #{tpu_custom_call.1} parent=1 // pred_check
      _
    $region27: #{tpu_custom_call.1} parent=1 // pred_check_branch
      %90 = sbr.rel (0) target = $region29
    $region28: #{tpu_custom_call.1} parent=1 // pred_region
      %s92 = ssub.s32 32, 32
      %93 = vsyncadd [#allocation5], %s92
      %s95 = sshll.u32 [#allocation8], 4
      %s96 = int_to_ptr.vmem [resolvable:$true] %s95
      %98 = dma.vmem_to_hbm [thread:$0]  %s96, 32, %s3, [#allocation5]
    $region29: #{tpu_custom_call.1} parent=1 // pred_fallthru
      _
    // Predicated region
    $region30: #{tpu_custom_call.1} parent=1 // pred_check
      _
    $region31: #{tpu_custom_call.1} parent=1 // pred_check_branch
      %100 = sbr.rel (0) target = $region33
    $region32: #{tpu_custom_call.1} parent=1 // pred_region
      %101 = dma.done [#allocation5], 32
    $region33: #{tpu_custom_call.1} parent=1 // pred_fallthru
      _
    %102 = vsyncpa [#allocation4], 1
    %103 = vsyncpa [#allocation7], 1
    %104 = vsyncpa [#allocation5], 1

</llo_original>
